<compile_context>
chip_gen: v7x
topology: tpu7x:2x2x1
jax: 0.10.0
libtpu: 0.0.40
codegen_flags: <defaults>
</compile_context>

<pallas_src>
import jax
import jax.numpy as jnp
from jax.experimental import pallas as pl
from jax.experimental.pallas import tpu as pltpu

EPS = 1e-5
MOMENTUM = 0.1


# ----------------------------------------------------------------------------
# tiling policy
# ----------------------------------------------------------------------------
def _round_up(x: int, m: int) -> int:
    return ((x + m - 1) // m) * m


def _step_footprint_bytes(n: int, td: int, in_bytes: int, out_bytes: int) -> int:
    """Estimated resident bytes for one grid step: double-buffered input and
    output tiles plus ~3 f32 temporaries of tile size and the (1, td) stats."""
    tile_elems = n * td
    return tile_elems * (2 * in_bytes + 2 * out_bytes + 3 * 4) + 12 * td * 4


def _choose_feature_tile(n: int, d: int, in_bytes: int, out_bytes: int,
                         budget_bytes: int = 24 * 1024 * 1024):
    """Returns (d_pad, td): padded feature dim (multiple of 128) and the lane
    tile width.  td is the largest multiple of 128 dividing d_pad whose
    per-step footprint fits the budget, excluding the single-block choice when
    d_pad > 128 so the grid has >= 2 steps (v7x megacore)."""
    d_pad = _round_up(d, 128)
    best = 128
    td = 128
    while td <= d_pad:
        if d_pad % td == 0:
            if _step_footprint_bytes(n, td, in_bytes, out_bytes) <= budget_bytes:
                if not (td == d_pad and d_pad > 128):   # keep grid >= 2 if possible
                    best = td
        td += 128
    return d_pad, best


def _vmem_limit_bytes(n: int, td: int, in_bytes: int, out_bytes: int) -> int:
    fp = _step_footprint_bytes(n, td, in_bytes, out_bytes)
    return int(min(max(fp * 5 // 4, 32 * 1024 * 1024), 48 * 1024 * 1024))


# ----------------------------------------------------------------------------
# kernels
# ----------------------------------------------------------------------------
def _refined_reciprocal(denom):
    # EUP approximate reciprocal + one Newton step -> full f32 accuracy,
    # keeps the VPU divide off the critical path.  Operates on (1, td) only.
    inv = pl.reciprocal(denom, approx=True)
    return inv * (2.0 - denom * inv)


def _train_kernel(x_ref, rm_ref, rv_ref, o_ref, new_rm_ref, new_rv_ref):
    x = x_ref[...].astype(jnp.float32)
    n = x.shape[0]
    mean = jnp.sum(x, axis=0, keepdims=True) * (1.0 / n)
    centered = x - mean
    # torch.var(dim=0) default is the unbiased estimator (divide by N-1).
    # NOTE: for n == 1 torch yields NaN; here max(n-1, 1) yields 0 instead.
    var = jnp.sum(centered * centered, axis=0, keepdims=True) * (1.0 / max(n - 1, 1))
    denom = var + EPS
    inv = _refined_reciprocal(denom)
    o_ref[...] = (centered * inv).astype(o_ref.dtype)

    # Fused EMA update of the running statistics.
    rm = rm_ref[...].astype(jnp.float32)
    rv = rv_ref[...].astype(jnp.float32)
    new_rm_ref[...] = ((1.0 - MOMENTUM) * rm + MOMENTUM * mean).astype(new_rm_ref.dtype)
    new_rv_ref[...] = ((1.0 - MOMENTUM) * rv + MOMENTUM * var).astype(new_rv_ref.dtype)


def _eval_kernel(x_ref, rm_ref, rv_ref, o_ref):
    x = x_ref[...].astype(jnp.float32)
    mean = rm_ref[...].astype(jnp.float32)
    denom = rv_ref[...].astype(jnp.float32) + EPS
    inv = _refined_reciprocal(denom)
    o_ref[...] = ((x - mean) * inv).astype(o_ref.dtype)


# ----------------------------------------------------------------------------
# wrappers
# ----------------------------------------------------------------------------
def class_standardization_train(class_fea, running_mean, running_var):
    """Training-mode forward: returns (result, new_running_mean, new_running_var)."""
    n, d = class_fea.shape
    in_bytes = class_fea.dtype.itemsize
    d_pad, td = _choose_feature_tile(n, d, in_bytes, in_bytes)
    grid = (d_pad // td,)

    x = class_fea
    rm = running_mean.reshape(1, d)
    rv = running_var.reshape(1, d)
    if d_pad != d:
        pad = d_pad - d
        x = jnp.pad(x, ((0, 0), (0, pad)))
        rm = jnp.pad(rm, ((0, 0), (0, pad)))
        rv = jnp.pad(rv, ((0, 0), (0, pad)))

    result, new_rm, new_rv = pl.pallas_call(
        _train_kernel,
        out_shape=(
            jax.ShapeDtypeStruct((n, d_pad), class_fea.dtype),
            jax.ShapeDtypeStruct((1, d_pad), running_mean.dtype),
            jax.ShapeDtypeStruct((1, d_pad), running_var.dtype),
        ),
        grid=grid,
        in_specs=[
            pl.BlockSpec((n, td), lambda j: (0, j)),
            pl.BlockSpec((1, td), lambda j: (0, j)),
            pl.BlockSpec((1, td), lambda j: (0, j)),
        ],
        out_specs=(
            pl.BlockSpec((n, td), lambda j: (0, j)),
            pl.BlockSpec((1, td), lambda j: (0, j)),
            pl.BlockSpec((1, td), lambda j: (0, j)),
        ),
        compiler_params=pltpu.CompilerParams(
            dimension_semantics=("parallel",),
            vmem_limit_bytes=_vmem_limit_bytes(n, td, in_bytes, in_bytes),
        ),
    )(x, rm, rv)

    if d_pad != d:
        result = result[:, :d]
        new_rm = new_rm[:, :d]
        new_rv = new_rv[:, :d]
    return result, new_rm.reshape(d), new_rv.reshape(d)


def class_standardization_eval(class_fea, running_mean, running_var):
    """Eval-mode forward: standardize with the running statistics."""
    n, d = class_fea.shape
    in_bytes = class_fea.dtype.itemsize
    d_pad, td = _choose_feature_tile(n, d, in_bytes, in_bytes)
    grid = (d_pad // td,)

    x = class_fea
    rm = running_mean.reshape(1, d)   # streamed in stored dtype; cast in-kernel
    rv = running_var.reshape(1, d)
    if d_pad != d:
        pad = d_pad - d
        x = jnp.pad(x, ((0, 0), (0, pad)))
        rm = jnp.pad(rm, ((0, 0), (0, pad)))
        rv = jnp.pad(rv, ((0, 0), (0, pad)))

    result = pl.pallas_call(
        _eval_kernel,
        out_shape=jax.ShapeDtypeStruct((n, d_pad), class_fea.dtype),
        grid=grid,
        in_specs=[
            pl.BlockSpec((n, td), lambda j: (0, j)),
            pl.BlockSpec((1, td), lambda j: (0, j)),
            pl.BlockSpec((1, td), lambda j: (0, j)),
        ],
        out_specs=pl.BlockSpec((n, td), lambda j: (0, j)),
        compiler_params=pltpu.CompilerParams(
            dimension_semantics=("parallel",),
            vmem_limit_bytes=_vmem_limit_bytes(n, td, in_bytes, in_bytes),
        ),
    )(x, rm, rv)

    if d_pad != d:
        result = result[:, :d]
    return result


# ----------------------------------------------------------------------------
# pure-JAX references
# ----------------------------------------------------------------------------
def _reference_train(x, rm, rv, momentum=MOMENTUM):
    mean = x.mean(axis=0)
    var = x.var(axis=0, ddof=1)
    result = (x - mean[None, :]) / (var[None, :] + EPS)
    new_rm = (1.0 - momentum) * rm + momentum * mean
    new_rv = (1.0 - momentum) * rv + momentum * var
    return result, new_rm, new_rv


def _reference_eval(x, rm, rv):
    return (x - rm[None, :]) / (rv[None, :] + EPS)


if __name__ == "__main__":
    key = jax.random.PRNGKey(0)
    k1, k2, k3 = jax.random.split(key, 3)

    # --- small shape with feat_dim not a multiple of 128 (padding path) ---
    N, D = 8, 32
    class_fea = jax.random.normal(k1, (N, D), dtype=jnp.float32)
    running_mean = jnp.zeros((D,), dtype=jnp.float32)
    running_var = jnp.ones((D,), dtype=jnp.float32)

    res, new_rm, new_rv = class_standardization_train(class_fea, running_mean, running_var)
    res = jax.block_until_ready(res)
    ref_res, ref_rm, ref_rv = _reference_train(class_fea, running_mean, running_var)
    assert jnp.allclose(res, ref_res, atol=1e-4, rtol=1e-4)
    assert jnp.allclose(new_rm, ref_rm, atol=1e-5, rtol=1e-5)
    assert jnp.allclose(new_rv, ref_rv, atol=1e-5, rtol=1e-5)

    # --- eval path (uses the updated running stats) ---
    res_eval = class_standardization_eval(class_fea, new_rm, new_rv)
    res_eval = jax.block_until_ready(res_eval)
    ref_eval = _reference_eval(class_fea, ref_rm, ref_rv)
    assert jnp.allclose(res_eval, ref_eval, atol=1e-4, rtol=1e-4)

    # --- lane-tileable shape exercising a 2-step grid ---
    N2, D2 = 16, 256
    x2 = jax.random.normal(k2, (N2, D2), dtype=jnp.float32)
    rm2 = jnp.zeros((D2,), dtype=jnp.float32)
    rv2 = jnp.ones((D2,), dtype=jnp.float32)
    res2, nrm2, nrv2 = class_standardization_train(x2, rm2, rv2)
    res2 = jax.block_until_ready(res2)
    ref2, ref_rm2, ref_rv2 = _reference_train(x2, rm2, rv2)
    assert jnp.allclose(res2, ref2, atol=1e-4, rtol=1e-4)
    assert jnp.allclose(nrm2, ref_rm2, atol=1e-5, rtol=1e-5)
    assert jnp.allclose(nrv2, ref_rv2, atol=1e-5, rtol=1e-5)

    # --- larger feature dim exercising a wider (512-lane) tile ---
    N3, D3 = 64, 1024
    x3 = jax.random.normal(k3, (N3, D3), dtype=jnp.float32)
    rm3 = jnp.zeros((D3,), dtype=jnp.float32)
    rv3 = jnp.ones((D3,), dtype=jnp.float32)
    res3, _, _ = class_standardization_train(x3, rm3, rv3)
    res3 = jax.block_until_ready(res3)
    ref3, _, _ = _reference_train(x3, rm3, rv3)
    assert jnp.allclose(res3, ref3, atol=1e-4, rtol=1e-4)

    res3_eval = class_standardization_eval(x3, rm3, rv3)
    res3_eval = jax.block_until_ready(res3_eval)
    ref3_eval = _reference_eval(x3, rm3, rv3)
    assert jnp.allclose(res3_eval, ref3_eval, atol=1e-4, rtol=1e-4)

    print("KERNEL_OK")
</pallas_src>

<mosaic_0001>
module attributes {stable_mosaic.version = 11 : i64} {
  func.func @_train_kernel(%arg0: i32, %arg1: memref<8x128xf32, #tpu.memory_space<vmem>>, %arg2: memref<1x128xf32, #tpu.memory_space<vmem>>, %arg3: memref<1x128xf32, #tpu.memory_space<vmem>>, %arg4: memref<8x128xf32, #tpu.memory_space<vmem>>, %arg5: memref<1x128xf32, #tpu.memory_space<vmem>>, %arg6: memref<1x128xf32, #tpu.memory_space<vmem>>) attributes {dimension_semantics = [#tpu.dimension_semantics<parallel>], iteration_bounds = array<i64: 1>, scalar_prefetch = 0 : i64, scratch_operands = 0 : i64, tpu.core_type = #tpu.core_type<tc>, window_params = [{transform_indices = @transform_0, window_bounds = array<i64: 8, 128>}, {transform_indices = @transform_1, window_bounds = array<i64: 1, 128>}, {transform_indices = @transform_2, window_bounds = array<i64: 1, 128>}, {transform_indices = @transform_3, window_bounds = array<i64: 8, 128>}, {transform_indices = @transform_4, window_bounds = array<i64: 1, 128>}, {transform_indices = @transform_5, window_bounds = array<i64: 1, 128>}]} {
    %c0 = arith.constant 0 : index
    %c0_0 = arith.constant 0 : index
    %0 = vector.load %arg1[%c0, %c0_0] : memref<8x128xf32, #tpu.memory_space<vmem>>, vector<8x128xf32>
    %cst = arith.constant dense<0.000000e+00> : vector<128xf32>
    %1 = vector.multi_reduction <add>, %0, %cst [0] : vector<8x128xf32> to vector<128xf32>
    %2 = vector.shape_cast %1 : vector<128xf32> to vector<1x128xf32>
    %cst_1 = arith.constant 1.250000e-01 : f32
    %3 = vector.broadcast %cst_1 : f32 to vector<1x128xf32>
    %4 = arith.mulf %2, %3 : vector<1x128xf32>
    %5 = vector.broadcast %4 : vector<1x128xf32> to vector<8x128xf32>
    %6 = arith.subf %0, %5 : vector<8x128xf32>
    %7 = arith.mulf %6, %6 : vector<8x128xf32>
    %cst_2 = arith.constant dense<0.000000e+00> : vector<128xf32>
    %8 = vector.multi_reduction <add>, %7, %cst_2 [0] : vector<8x128xf32> to vector<128xf32>
    %9 = vector.shape_cast %8 : vector<128xf32> to vector<1x128xf32>
    %cst_3 = arith.constant 0.142857149 : f32
    %10 = vector.broadcast %cst_3 : f32 to vector<1x128xf32>
    %11 = arith.mulf %9, %10 : vector<1x128xf32>
    %cst_4 = arith.constant 9.99999974E-6 : f32
    %12 = vector.broadcast %cst_4 : f32 to vector<1x128xf32>
    %13 = arith.addf %11, %12 : vector<1x128xf32>
    %14 = tpu.reciprocal %13 {approx = true} : vector<1x128xf32> -> vector<1x128xf32>
    %15 = arith.mulf %13, %14 : vector<1x128xf32>
    %cst_5 = arith.constant 2.000000e+00 : f32
    %16 = vector.broadcast %cst_5 : f32 to vector<1x128xf32>
    %17 = arith.subf %16, %15 : vector<1x128xf32>
    %18 = arith.mulf %14, %17 : vector<1x128xf32>
    %19 = vector.broadcast %18 : vector<1x128xf32> to vector<8x128xf32>
    %20 = arith.mulf %6, %19 : vector<8x128xf32>
    %c0_6 = arith.constant 0 : index
    %c0_7 = arith.constant 0 : index
    %21 = vector.load %arg4[%c0_6, %c0_7] : memref<8x128xf32, #tpu.memory_space<vmem>>, vector<8x128xf32>
    tpu.vector_store %arg4[%c0_6, %c0_7], %20 {strides = array<i32>} : memref<8x128xf32, #tpu.memory_space<vmem>>, vector<8x128xf32>,
    %c0_8 = arith.constant 0 : index
    %c0_9 = arith.constant 0 : index
    %22 = vector.load %arg2[%c0_8, %c0_9] : memref<1x128xf32, #tpu.memory_space<vmem>>, vector<1x128xf32>
    %c0_10 = arith.constant 0 : index
    %c0_11 = arith.constant 0 : index
    %23 = vector.load %arg3[%c0_10, %c0_11] : memref<1x128xf32, #tpu.memory_space<vmem>>, vector<1x128xf32>
    %cst_12 = arith.constant 0.899999976 : f32
    %24 = vector.broadcast %cst_12 : f32 to vector<1x128xf32>
    %25 = arith.mulf %24, %22 : vector<1x128xf32>
    %cst_13 = arith.constant 1.000000e-01 : f32
    %26 = vector.broadcast %cst_13 : f32 to vector<1x128xf32>
    %27 = arith.mulf %26, %4 : vector<1x128xf32>
    %28 = arith.addf %25, %27 : vector<1x128xf32>
    %c0_14 = arith.constant 0 : index
    %c0_15 = arith.constant 0 : index
    %29 = vector.load %arg5[%c0_14, %c0_15] : memref<1x128xf32, #tpu.memory_space<vmem>>, vector<1x128xf32>
    tpu.vector_store %arg5[%c0_14, %c0_15], %28 {strides = array<i32>} : memref<1x128xf32, #tpu.memory_space<vmem>>, vector<1x128xf32>,
    %cst_16 = arith.constant 0.899999976 : f32
    %30 = vector.broadcast %cst_16 : f32 to vector<1x128xf32>
    %31 = arith.mulf %30, %23 : vector<1x128xf32>
    %cst_17 = arith.constant 1.000000e-01 : f32
    %32 = vector.broadcast %cst_17 : f32 to vector<1x128xf32>
    %33 = arith.mulf %32, %11 : vector<1x128xf32>
    %34 = arith.addf %31, %33 : vector<1x128xf32>
    %c0_18 = arith.constant 0 : index
    %c0_19 = arith.constant 0 : index
    %35 = vector.load %arg6[%c0_18, %c0_19] : memref<1x128xf32, #tpu.memory_space<vmem>>, vector<1x128xf32>
    tpu.vector_store %arg6[%c0_18, %c0_19], %34 {strides = array<i32>} : memref<1x128xf32, #tpu.memory_space<vmem>>, vector<1x128xf32>,
    return
  }
  func.func @transform_0(%arg0: i32) -> (i32, i32) {
    %c0_i32 = arith.constant 0 : i32
    %c0_i32_0 = arith.constant 0 : i32
    return %c0_i32, %arg0 : i32, i32
  }
  func.func @transform_1(%arg0: i32) -> (i32, i32) {
    %c0_i32 = arith.constant 0 : i32
    %c0_i32_0 = arith.constant 0 : i32
    return %c0_i32, %arg0 : i32, i32
  }
  func.func @transform_2(%arg0: i32) -> (i32, i32) {
    %c0_i32 = arith.constant 0 : i32
    %c0_i32_0 = arith.constant 0 : i32
    return %c0_i32, %arg0 : i32, i32
  }
  func.func @transform_3(%arg0: i32) -> (i32, i32) {
    %c0_i32 = arith.constant 0 : i32
    %c0_i32_0 = arith.constant 0 : i32
    return %c0_i32, %arg0 : i32, i32
  }
  func.func @transform_4(%arg0: i32) -> (i32, i32) {
    %c0_i32 = arith.constant 0 : i32
    %c0_i32_0 = arith.constant 0 : i32
    return %c0_i32, %arg0 : i32, i32
  }
  func.func @transform_5(%arg0: i32) -> (i32, i32) {
    %c0_i32 = arith.constant 0 : i32
    %c0_i32_0 = arith.constant 0 : i32
    return %c0_i32, %arg0 : i32, i32
  }
}

</mosaic_0001>

<llo_original>
// kernel: tpu_custom_call.1
$region0: #{tpu_custom_call.1}
  #allocation0 [shape = 'u32[]', space=smem, size = 0x4, offset = 0x4, fixed_abs, tag = 'smem constant byte address 0x4 - core index']
  #allocation1 [shape = 'u32[144,128]{1,0:T(1,128)}', space=vmem, size = 0x12000, scoped, tag = 'internal scratch']
  %s0 = inlined_call_operand.hbm [shape: f32[8,128], index: 0, kind: input, shape index: {}]
  %s1 = inlined_call_operand.vmem [shape: f32[1,128], index: 1, kind: input, shape index: {}]
  %s2 = inlined_call_operand.vmem [shape: f32[1,128], index: 2, kind: input, shape index: {}]
  %s3 = inlined_call_operand.hbm [shape: f32[8,128], index: 3, kind: output, shape index: {0}]
  %s4 = inlined_call_operand.hbm [shape: f32[1,128], index: 4, kind: output, shape index: {1}]
  %s5 = inlined_call_operand.hbm [shape: f32[1,128], index: 5, kind: output, shape index: {2}]
  %6 = xla_tuple %s3, %s4, %s5
  %s7 = sld [smem:[#allocation0]]
  $region42: #{tpu_custom_call.1} parent=0
    _
  %s9 = ssub.s32 1, %s7
  %s10 = scalar_select 0, %s9, %s7
  $region1: #{tpu_custom_call.1} parent=0
    #allocation2 [shape = 'u8[4096]{0}', space=vmem, size = 0x1000, scoped, tag = 'input window, operand 0, single buffered']
    #allocation3 [shape = 's32[1]{0}', space=sflag, size = 0x4, scoped, tag = 'scoped memory for tpu_custom_call.1']
    #allocation4 [shape = 's32[1]{0}', space=sflag, size = 0x4, scoped, tag = 'scoped memory for tpu_custom_call.1']
    #allocation5 [shape = 'u8[4096]{0}', space=vmem, size = 0x1000, scoped, tag = 'output window, operand 0, single buffered']
    #allocation6 [shape = 'u8[512]{0}', space=vmem, size = 0x400, scoped, tag = 'output window, operand 1, single buffered']
    #allocation7 [shape = 's32[1]{0}', space=sflag, size = 0x4, scoped, tag = 'scoped memory for tpu_custom_call.1']
    #allocation8 [shape = 'u8[512]{0}', space=vmem, size = 0x400, scoped, tag = 'output window, operand 2, single buffered']
    %11 = vsyncpa [#allocation3], 0
    %12 = vsyncpa [#allocation4], 0
    %13 = vsyncpa [#allocation7], 0
    // Predicated region
    $region2: #{tpu_custom_call.1} parent=1 // pred_check
      _
    $region3: #{tpu_custom_call.1} parent=1 // pred_check_branch
      %15 = sbr.rel (0) target = $region5
    $region4: #{tpu_custom_call.1} parent=1 // pred_region
      %s17 = ssub.s32 128, 128
      %18 = vsyncadd [#allocation3], %s17
      %s20 = sshll.u32 [#allocation2], 4
      %s21 = int_to_ptr.vmem [resolvable:$true] %s20
      %23 = dma.hbm_to_vmem [thread:$0]  %s0, 128, %s21, [#allocation3]
    $region5: #{tpu_custom_call.1} parent=1 // pred_fallthru
      _
    // Predicated region
    $region6: #{tpu_custom_call.1} parent=1 // pred_check
      _
    $region7: #{tpu_custom_call.1} parent=1 // pred_check_branch
      %25 = sbr.rel (0) target = $region9
    $region8: #{tpu_custom_call.1} parent=1 // pred_region
      _
    $region9: #{tpu_custom_call.1} parent=1 // pred_fallthru
      _
    // Predicated region
    $region10: #{tpu_custom_call.1} parent=1 // pred_check
      _
    $region11: #{tpu_custom_call.1} parent=1 // pred_check_branch
      %27 = sbr.rel (0) target = $region13
    $region12: #{tpu_custom_call.1} parent=1 // pred_region
      _
    $region13: #{tpu_custom_call.1} parent=1 // pred_fallthru
      _
    // Predicated region
    $region14: #{tpu_custom_call.1} parent=1 // pred_check
      _
    $region15: #{tpu_custom_call.1} parent=1 // pred_check_branch
      %29 = sbr.rel (0) target = $region17
    $region16: #{tpu_custom_call.1} parent=1 // pred_region
      %30 = dma.done [#allocation3], 128
    $region17: #{tpu_custom_call.1} parent=1 // pred_fallthru
      _
    %v31 = vld [vmem:[#allocation2] sm:$0xff]
    %v32 = vrot.slane %v31, 4
    %v33 = vadd.f32 %v31, %v32
    %v34 = vrot.slane %v33, 2
    %v35 = vadd.f32 %v33, %v34
    %v36 = vrot.slane %v35, 1
    %v37 = vadd.f32 %v35, %v36
    %v38 = vmul.f32 %v37, 0.125
    %v39 = vsub.f32 %v31, %v38
    %v40 = vmul.f32 %v39, %v39
    %v41 = vrot.slane %v40, 4
    %v42 = vadd.f32 %v40, %v41
    %v43 = vrot.slane %v42, 2
    %v44 = vadd.f32 %v42, %v43
    %v45 = vrot.slane %v44, 1
    %v46 = vadd.f32 %v44, %v45
    %v47 = vmul.f32 %v46, 0.14285715
    %v48 = vadd.f32 %v47, 1e-05
    %v49 = vrcp.pop %v48
    %v50 = vmul.f32 %v48, %v49
    %v51 = vsub.f32 2.0, %v50
    %v52 = vmul.f32 %v49, %v51
    %v53 = vmul.f32 %v39, %v52
    %54 = vst [vmem:[#allocation5] sm:$0xff] %v53
    %v55 = vld [vmem:[%s1] sm:$0x1]
    %v56 = vld [vmem:[%s2] sm:$0x1]
    %v57 = vmul.f32 %v55, 0.9
    %v58 = vmul.f32 %v38, 0.1
    %v59 = vadd.f32 %v57, %v58
    %60 = vst [vmem:[#allocation6] sm:$0x1] %v59
    %v61 = vmul.f32 %v56, 0.9
    %v62 = vmul.f32 %v47, 0.1
    %v63 = vadd.f32 %v61, %v62
    %64 = vst [vmem:[#allocation8] sm:$0x1] %v63
    // Predicated region
    $region18: #{tpu_custom_call.1} parent=1 // pred_check
      _
    $region19: #{tpu_custom_call.1} parent=1 // pred_check_branch
      %66 = sbr.rel (0) target = $region21
    $region20: #{tpu_custom_call.1} parent=1 // pred_region
      %s68 = ssub.s32 128, 128
      %69 = vsyncadd [#allocation4], %s68
      %s71 = sshll.u32 [#allocation5], 4
      %s72 = int_to_ptr.vmem [resolvable:$true] %s71
      %74 = dma.vmem_to_hbm [thread:$0]  %s72, 128, %s3, [#allocation4]
    $region21: #{tpu_custom_call.1} parent=1 // pred_fallthru
      _
    // Predicated region
    $region22: #{tpu_custom_call.1} parent=1 // pred_check
      _
    $region23: #{tpu_custom_call.1} parent=1 // pred_check_branch
      %76 = sbr.rel (0) target = $region25
    $region24: #{tpu_custom_call.1} parent=1 // pred_region
      %s78 = ssub.s32 16, 16
      %79 = vsyncadd [#allocation7], %s78
      %s81 = sshll.u32 [#allocation6], 4
      %s82 = int_to_ptr.vmem [resolvable:$true] %s81
      %84 = dma.vmem_to_hbm [thread:$0]  %s82, 16, %s4, [#allocation7]
    $region25: #{tpu_custom_call.1} parent=1 // pred_fallthru
      _
    // Predicated region
    $region26: #{tpu_custom_call.1} parent=1 // pred_check
      _
    $region27: #{tpu_custom_call.1} parent=1 // pred_check_branch
      %86 = sbr.rel (0) target = $region29
    $region28: #{tpu_custom_call.1} parent=1 // pred_region
      %s88 = ssub.s32 16, 16
      %89 = vsyncadd [#allocation7], %s88
      %s91 = sshll.u32 [#allocation8], 4
      %s92 = int_to_ptr.vmem [resolvable:$true] %s91
      %94 = dma.vmem_to_hbm [thread:$0]  %s92, 16, %s5, [#allocation7]
    $region29: #{tpu_custom_call.1} parent=1 // pred_fallthru
      _
    // Predicated region
    $region30: #{tpu_custom_call.1} parent=1 // pred_check
      _
    $region31: #{tpu_custom_call.1} parent=1 // pred_check_branch
      %96 = sbr.rel (0) target = $region33
    $region32: #{tpu_custom_call.1} parent=1 // pred_region
      %97 = dma.done [#allocation4], 128
    $region33: #{tpu_custom_call.1} parent=1 // pred_fallthru
      _
    // Predicated region
    $region34: #{tpu_custom_call.1} parent=1 // pred_check
      _
    $region35: #{tpu_custom_call.1} parent=1 // pred_check_branch
      %99 = sbr.rel (0) target = $region37
    $region36: #{tpu_custom_call.1} parent=1 // pred_region
      %100 = dma.done [#allocation7], 16
    $region37: #{tpu_custom_call.1} parent=1 // pred_fallthru
      _
    // Predicated region
    $region38: #{tpu_custom_call.1} parent=1 // pred_check
      _
    $region39: #{tpu_custom_call.1} parent=1 // pred_check_branch
      %102 = sbr.rel (0) target = $region41
    $region40: #{tpu_custom_call.1} parent=1 // pred_region
      %103 = dma.done [#allocation7], 16
    $region41: #{tpu_custom_call.1} parent=1 // pred_fallthru
      _
    %104 = vsyncpa [#allocation3], 1
    %105 = vsyncpa [#allocation4], 1
    %106 = vsyncpa [#allocation7], 1

</llo_original>
